<compile_context>
chip_gen: v6e
topology: v6e:2x2x1
jax: 0.10.0
libtpu: 0.0.40
codegen_flags: <defaults>
</compile_context>

<pallas_src>
import functools

import jax
import jax.numpy as jnp
import numpy as np
from jax.experimental import pallas as pl
from jax.experimental.pallas import tpu as pltpu

# Module hyper-parameters (defaults of RunningNorm.__init__)
DIM = 32
DEMEAN = True
DESTD = True
CLIP = 5.0

_LANES = 128
_SUBLANES = 8
_VMEM_LIMIT = 32 * 1024 * 1024


# ---------------------------------------------------------------------------
# Packing helpers (lane-dense layout: `pack` batch rows per 128-lane vreg row)
# ---------------------------------------------------------------------------
def _lane_pack(dim):
    if dim <= _LANES and _LANES % dim == 0:
        return _LANES // dim
    return 1


def _pack_x(x):
    """Zero-pad N to a multiple of pack*8 and reshape (N, D) -> (N/pack, D*pack)."""
    N, D = x.shape
    pack = _lane_pack(D)
    n_pad = ((-N) % (pack * _SUBLANES)) if pack > 1 else 0
    xp = jnp.pad(x, ((0, n_pad), (0, 0))) if n_pad else x
    np_rows = (N + n_pad) // pack
    return xp.reshape(np_rows, D * pack), pack, np_rows, n_pad


# ---------------------------------------------------------------------------
# Fused train kernel: phase 0 = batch reduction + stat merge, phase 1 = norm.
# ---------------------------------------------------------------------------
def _train_fused_kernel(n_ref, mu0p_ref, var0_ref, x_ref,
                        y_ref, new_mean_ref, new_var_ref, new_std_ref,
                        sum_acc, sq_acc, scale_sc, bias_sc,
                        *, m_total, pad_count, pack, dim, np_rows, tile_rows,
                        need_mask, demean, destd, clip):
    phase = pl.program_id(0)
    i = pl.program_id(1)
    nt = pl.num_programs(1)

    # ------------------ phase 0: reduce + running-stat merge ----------------
    @pl.when(phase == 0)
    def _reduce():
        @pl.when(i == 0)
        def _init():
            sum_acc[...] = jnp.zeros_like(sum_acc)
            sq_acc[...] = jnp.zeros_like(sq_acc)

        # Centre on the old running mean (moments are shift-invariant): this
        # tames the E[x^2]-mean^2 cancellation once the running mean tracks x.
        xc = x_ref[...].astype(jnp.float32) - mu0p_ref[...]
        tb, dp = xc.shape

        def _accumulate(v):
            if sum_acc.shape[0] == _SUBLANES:          # tb % 8 == 0: VPU-only adds
                v3 = v.reshape(tb // _SUBLANES, _SUBLANES, dp)
                sum_acc[...] += jnp.sum(v3, axis=0)
                sq_acc[...] += jnp.sum(v3 * v3, axis=0)
            else:                                      # tiny-batch fallback
                sum_acc[...] += jnp.sum(v, axis=0, keepdims=True)
                sq_acc[...] += jnp.sum(v * v, axis=0, keepdims=True)

        if need_mask:
            # Only the last tile overruns the array: mask there, fast path else.
            @pl.when(i == nt - 1)
            def _masked():
                row = (jax.lax.broadcasted_iota(jnp.int32, (tb, dp), 0)
                       + i * tile_rows)
                _accumulate(jnp.where(row < np_rows, xc, 0.0))

            @pl.when(i < nt - 1)
            def _fast():
                _accumulate(xc)
        else:
            _accumulate(xc)

        @pl.when(i == nt - 1)
        def _finalize():
            s = jnp.sum(sum_acc[...], axis=0, keepdims=True)   # one XLU reduce
            q = jnp.sum(sq_acc[...], axis=0, keepdims=True)
            s_d = s[:, 0:dim]
            q_d = q[:, 0:dim]
            for g in range(1, pack):                  # fold lane groups -> (1, dim)
                s_d = s_d + s[:, g * dim:(g + 1) * dim]
                q_d = q_d + q[:, g * dim:(g + 1) * dim]

            mu0_d = mu0p_ref[:, 0:dim]
            if pad_count:
                # Zero-padded rows contributed (0 - mu0) each; remove exactly.
                s_d = s_d + pad_count * mu0_d
                q_d = q_d - pad_count * (mu0_d * mu0_d)

            inv_m = 1.0 / m_total
            d_mean = s_d * inv_m                      # E[x] - old_mean
            mean_x = mu0_d + d_mean
            var_x = jnp.maximum(q_d * inv_m - d_mean * d_mean, 0.0)

            n_old = n_ref[0].astype(jnp.float32)
            w = n_old / (n_old + m_total)
            old_var = var0_ref[...]
            new_var = (w * old_var + (1.0 - w) * var_x
                       + w * (1.0 - w) * d_mean * d_mean)
            new_var = jnp.maximum(new_var, 0.0)       # guard cancellation -> sqrt
            new_mean = w * mu0_d + (1.0 - w) * mean_x
            new_std = jnp.sqrt(new_var)
            new_mean_ref[...] = new_mean
            new_var_ref[...] = new_var
            new_std_ref[...] = new_std

            # Packed scale / bias consumed by the normalise phase.
            if destd:
                scale_d = 1.0 / (new_std + 1e-8)
            else:
                scale_d = jnp.ones_like(new_std)
            if demean:
                bias_d = -new_mean * scale_d
            else:
                bias_d = jnp.zeros_like(new_mean)
            for g in range(pack):
                scale_sc[:, g * dim:(g + 1) * dim] = scale_d
                bias_sc[:, g * dim:(g + 1) * dim] = bias_d

    # ------------------ phase 1: tiled elementwise normalise ----------------
    @pl.when(phase == 1)
    def _normalize():
        y = x_ref[...].astype(jnp.float32) * scale_sc[...] + bias_sc[...]
        if clip:
            y = jnp.clip(y, -clip, clip)
        y_ref[...] = y.astype(y_ref.dtype)


# ---------------------------------------------------------------------------
# Eval kernel: fma + clip with existing stats; identity when n == 0.
# ---------------------------------------------------------------------------
def _eval_kernel(n_ref, x_ref, scale_ref, bias_ref, y_ref, *, clip):
    @pl.when(n_ref[0] > 0)
    def _norm():
        y = x_ref[...].astype(jnp.float32) * scale_ref[...] + bias_ref[...]
        if clip:
            y = jnp.clip(y, -clip, clip)
        y_ref[...] = y.astype(y_ref.dtype)

    @pl.when(n_ref[0] <= 0)
    def _identity():
        y_ref[...] = x_ref[...]


# ---------------------------------------------------------------------------
# Wrappers
# ---------------------------------------------------------------------------
def running_norm_train(x, n, mean, var, *,
                       demean=DEMEAN, destd=DESTD, clip=CLIP, tile_rows=2048):
    """Training forward. Returns (y, new_n, new_mean, new_var, new_std)."""
    N, D = x.shape
    xp, pack, np_rows, n_pad = _pack_x(x)
    dp = D * pack

    tb = min(tile_rows, np_rows)
    nt = pl.cdiv(np_rows, tb)
    need_mask = (np_rows % tb) != 0
    acc_rows = _SUBLANES if tb % _SUBLANES == 0 else 1

    mu0p = jnp.tile(mean.astype(jnp.float32).reshape(1, D), (1, pack))

    kernel = functools.partial(
        _train_fused_kernel, m_total=float(N), pad_count=float(n_pad),
        pack=pack, dim=D, np_rows=np_rows, tile_rows=tb, need_mask=need_mask,
        demean=demean, destd=destd, clip=clip)

    stat = jax.ShapeDtypeStruct((1, D), jnp.float32)
    yp, new_mean, new_var, new_std = pl.pallas_call(
        kernel,
        out_shape=(jax.ShapeDtypeStruct((np_rows, dp), x.dtype),
                   stat, stat, stat),
        grid_spec=pltpu.PrefetchScalarGridSpec(
            num_scalar_prefetch=1,
            grid=(2, nt),                                        # (phase, tile)
            in_specs=[
                pl.BlockSpec((1, dp), lambda p, i, n_s: (0, 0)),    # packed old mean
                pl.BlockSpec((1, D), lambda p, i, n_s: (0, 0)),     # old var
                pl.BlockSpec((tb, dp), lambda p, i, n_s: (i, 0)),   # packed x
            ],
            out_specs=(
                # Phase 0 parks y on block 0 (never flushed: index unchanged);
                # phase 1 writes block i exactly once -> one HBM write / block.
                pl.BlockSpec((tb, dp), lambda p, i, n_s: (p * i, 0)),
                pl.BlockSpec((1, D), lambda p, i, n_s: (0, 0)),
                pl.BlockSpec((1, D), lambda p, i, n_s: (0, 0)),
                pl.BlockSpec((1, D), lambda p, i, n_s: (0, 0)),
            ),
            scratch_shapes=[pltpu.VMEM((acc_rows, dp), jnp.float32),
                            pltpu.VMEM((acc_rows, dp), jnp.float32),
                            pltpu.VMEM((1, dp), jnp.float32),     # packed scale
                            pltpu.VMEM((1, dp), jnp.float32)],    # packed bias
        ),
        compiler_params=pltpu.CompilerParams(
            # TODO(synk): on v7x, use CORE_PARALLEL / pl.core_map with per-core
            # partial accumulators to engage both TensorCores.
            dimension_semantics=("arbitrary", "arbitrary"),
            vmem_limit_bytes=_VMEM_LIMIT),
    )(n.reshape(1).astype(jnp.int32),
      mu0p,
      var.astype(jnp.float32).reshape(1, D),
      xp)

    # TODO(synk): PyTorch keeps n as int64; int32 here (fine for <2^31 samples).
    new_n = n + jnp.int32(N)
    y = yp.reshape(np_rows * pack, D)[:N]
    return y, new_n, new_mean.reshape(D), new_var.reshape(D), new_std.reshape(D)


def running_norm_eval(x, n, mean, std, *,
                      demean=DEMEAN, destd=DESTD, clip=CLIP, tile_rows=2048):
    """Eval forward (no stat update)."""
    N, D = x.shape
    xp, pack, np_rows, _ = _pack_x(x)
    dp = D * pack
    tb = min(tile_rows, np_rows)
    nt = pl.cdiv(np_rows, tb)

    meanf = mean.astype(jnp.float32).reshape(1, D)
    stdf = std.astype(jnp.float32).reshape(1, D)
    scale = (1.0 / (stdf + 1e-8)) if destd else jnp.ones((1, D), jnp.float32)
    bias = (-meanf * scale) if demean else jnp.zeros((1, D), jnp.float32)
    scale_p = jnp.tile(scale, (1, pack))
    bias_p = jnp.tile(bias, (1, pack))

    kernel = functools.partial(_eval_kernel, clip=clip)
    yp = pl.pallas_call(
        kernel,
        out_shape=jax.ShapeDtypeStruct((np_rows, dp), x.dtype),
        grid_spec=pltpu.PrefetchScalarGridSpec(
            num_scalar_prefetch=1,
            grid=(nt,),
            in_specs=[
                pl.BlockSpec((tb, dp), lambda i, n_s: (i, 0)),
                pl.BlockSpec((1, dp), lambda i, n_s: (0, 0)),
                pl.BlockSpec((1, dp), lambda i, n_s: (0, 0)),
            ],
            out_specs=pl.BlockSpec((tb, dp), lambda i, n_s: (i, 0)),
        ),
        compiler_params=pltpu.CompilerParams(
            dimension_semantics=("parallel",),
            vmem_limit_bytes=_VMEM_LIMIT),
    )(n.reshape(1).astype(jnp.int32), xp, scale_p, bias_p)
    return yp.reshape(np_rows * pack, D)[:N]


# ---------------------------------------------------------------------------
# Pure-JAX reference (mirrors the PyTorch module exactly)
# ---------------------------------------------------------------------------
def _ref_update(x, n, mean, var):
    mean_x = jnp.mean(x, axis=0)
    var_x = jnp.mean((x - mean_x) ** 2, axis=0)
    m = x.shape[0]
    w = n.astype(x.dtype) / (m + n).astype(x.dtype)
    new_var = w * var + (1 - w) * var_x + w * (1 - w) * (mean_x - mean) ** 2
    new_mean = w * mean + (1 - w) * mean_x
    new_std = jnp.sqrt(new_var)
    return n + m, new_mean, new_var, new_std


def _ref_norm(x, n, mean, std):
    y = x
    if DEMEAN:
        y = y - mean
    if DESTD:
        y = y / (std + 1e-8)
    if CLIP:
        y = jnp.clip(y, -CLIP, CLIP)
    return jnp.where(n > 0, y, x)


def _ref_train(x, n, mean, var):
    new_n, new_mean, new_var, new_std = _ref_update(x, n, mean, var)
    return _ref_norm(x, new_n, new_mean, new_std), new_n, new_mean, new_var, new_std


# ---------------------------------------------------------------------------
if __name__ == "__main__":
    key = jax.random.PRNGKey(0)
    k1, k2, k3, k4, k5, k6 = jax.random.split(key, 6)

    dim = DIM

    # ---------------- small shapes (batch=8, dim=32): padding path ----------
    batch = 8
    n = jnp.int32(0)
    mean = jnp.zeros((dim,), jnp.float32)
    var = jnp.zeros((dim,), jnp.float32)
    std = jnp.zeros((dim,), jnp.float32)

    x1 = jax.random.normal(k1, (batch, dim), jnp.float32) * 3.0 + 1.5
    x2 = jax.random.normal(k2, (batch, dim), jnp.float32) * 0.5 - 2.0
    x3 = jax.random.normal(k3, (batch, dim), jnp.float32)

    # eval forward with n == 0: identity path
    y0 = running_norm_eval(x1, n, mean, std)
    y0_ref = _ref_norm(x1, n, mean, std)

    # Two training forwards. The second has a non-zero running mean, so it
    # exercises the centred accumulation and the exact zero-pad correction
    # (8 rows padded to 32).
    y1, n, mean, var, std = running_norm_train(x1, n, mean, var)
    r_y1, r_n, r_mean, r_var, r_std = _ref_train(
        x1, jnp.int32(0), jnp.zeros((dim,)), jnp.zeros((dim,)))
    y2, n, mean, var, std = running_norm_train(x2, n, mean, var)
    r_y2, r_n, r_mean, r_var, r_std = _ref_train(x2, r_n, r_mean, r_var)

    # eval forward with accumulated stats
    y3 = running_norm_eval(x3, n, mean, std)
    y3_ref = _ref_norm(x3, r_n, r_mean, r_std)

    jax.block_until_ready((y0, y1, y2, y3, n, mean, var, std))

    np.testing.assert_allclose(np.asarray(y0), np.asarray(y0_ref), rtol=1e-5, atol=1e-5)
    np.testing.assert_allclose(np.asarray(y1), np.asarray(r_y1), rtol=1e-5, atol=1e-5)
    np.testing.assert_allclose(np.asarray(y2), np.asarray(r_y2), rtol=1e-5, atol=1e-5)
    np.testing.assert_allclose(np.asarray(mean), np.asarray(r_mean), rtol=1e-5, atol=1e-5)
    np.testing.assert_allclose(np.asarray(var), np.asarray(r_var), rtol=1e-5, atol=1e-5)
    np.testing.assert_allclose(np.asarray(std), np.asarray(r_std), rtol=1e-5, atol=1e-5)
    np.testing.assert_allclose(np.asarray(y3), np.asarray(y3_ref), rtol=1e-5, atol=1e-5)
    assert int(n) == int(r_n) == 2 * batch

    # ---- larger batch: tiled grid, ragged last tile, pad correction at scale ----
    big = 2000                       # pads to 2016 rows -> 504 packed rows
    xb1 = jax.random.normal(k4, (big, dim), jnp.float32) * 2.0 + 0.5
    xb2 = jax.random.normal(k5, (big, dim), jnp.float32) * 1.5 - 1.0
    xe = jax.random.normal(k6, (big, dim), jnp.float32)
    nb = jnp.int32(0)
    mb = jnp.zeros((dim,), jnp.float32)
    vb = jnp.zeros((dim,), jnp.float32)

    yb1, nb, mb, vb, sb = running_norm_train(xb1, nb, mb, vb, tile_rows=128)
    rb_y1, rb_n, rb_m, rb_v, rb_s = _ref_train(
        xb1, jnp.int32(0), jnp.zeros((dim,)), jnp.zeros((dim,)))
    yb2, nb, mb, vb, sb = running_norm_train(xb2, nb, mb, vb, tile_rows=128)
    rb_y2, rb_n, rb_m, rb_v, rb_s = _ref_train(xb2, rb_n, rb_m, rb_v)

    yb_e = running_norm_eval(xe, nb, mb, sb, tile_rows=128)
    rb_e = _ref_norm(xe, rb_n, rb_m, rb_s)
    jax.block_until_ready((yb1, yb2, yb_e, mb, vb, sb))

    np.testing.assert_allclose(np.asarray(mb), np.asarray(rb_m), rtol=1e-4, atol=1e-4)
    np.testing.assert_allclose(np.asarray(vb), np.asarray(rb_v), rtol=1e-4, atol=1e-4)
    np.testing.assert_allclose(np.asarray(sb), np.asarray(rb_s), rtol=1e-4, atol=1e-4)
    np.testing.assert_allclose(np.asarray(yb1), np.asarray(rb_y1), rtol=1e-4, atol=1e-4)
    np.testing.assert_allclose(np.asarray(yb2), np.asarray(rb_y2), rtol=1e-4, atol=1e-4)
    np.testing.assert_allclose(np.asarray(yb_e), np.asarray(rb_e), rtol=1e-4, atol=1e-4)
    assert int(nb) == int(rb_n) == 2 * big

    print("KERNEL_OK")
</pallas_src>

<mosaic_0001>
module attributes {stable_mosaic.version = 11 : i64} {
  func.func @_eval_kernel(%arg0: i32, %arg1: memref<1xi32, #tpu.memory_space<smem>>, %arg2: memref<8x128xf32, #tpu.memory_space<vmem>>, %arg3: memref<1x128xf32, #tpu.memory_space<vmem>>, %arg4: memref<1x128xf32, #tpu.memory_space<vmem>>, %arg5: memref<8x128xf32, #tpu.memory_space<vmem>>) attributes {dimension_semantics = [#tpu.dimension_semantics<parallel>], iteration_bounds = array<i64: 1>, scalar_prefetch = 1 : i64, scratch_operands = 0 : i64, tpu.core_type = #tpu.core_type<tc>, window_params = [{transform_indices = @transform_0, window_bounds = array<i64: 8, 128>}, {pipeline_mode = #tpu.pipeline_mode<synchronous>, transform_indices = @transform_1, window_bounds = array<i64: 1, 128>}, {pipeline_mode = #tpu.pipeline_mode<synchronous>, transform_indices = @transform_2, window_bounds = array<i64: 1, 128>}, {transform_indices = @transform_3, window_bounds = array<i64: 8, 128>}]} {
    %c0 = arith.constant 0 : index
    %0 = memref.load %arg1[%c0] : memref<1xi32, #tpu.memory_space<smem>>
    %c0_i32 = arith.constant 0 : i32
    %1 = arith.cmpi sgt, %0, %c0_i32 : i32
    %2 = arith.extui %1 : i1 to i32
    %c0_i32_0 = arith.constant 0 : i32
    %3 = arith.cmpi ne, %2, %c0_i32_0 : i32
    scf.if %3 {
      %c0_4 = arith.constant 0 : index
      %c0_5 = arith.constant 0 : index
      %8 = vector.load %arg2[%c0_4, %c0_5] : memref<8x128xf32, #tpu.memory_space<vmem>>, vector<8x128xf32>
      %c0_6 = arith.constant 0 : index
      %c0_7 = arith.constant 0 : index
      %9 = vector.load %arg3[%c0_6, %c0_7] : memref<1x128xf32, #tpu.memory_space<vmem>>, vector<1x128xf32>
      %10 = vector.broadcast %9 : vector<1x128xf32> to vector<8x128xf32>
      %11 = arith.mulf %8, %10 : vector<8x128xf32>
      %c0_8 = arith.constant 0 : index
      %c0_9 = arith.constant 0 : index
      %12 = vector.load %arg4[%c0_8, %c0_9] : memref<1x128xf32, #tpu.memory_space<vmem>>, vector<1x128xf32>
      %13 = vector.broadcast %12 : vector<1x128xf32> to vector<8x128xf32>
      %14 = arith.addf %11, %13 : vector<8x128xf32>
      %cst = arith.constant -5.000000e+00 : f32
      %cst_10 = arith.constant 5.000000e+00 : f32
      %15 = vector.broadcast %cst : f32 to vector<8x128xf32>
      %16 = arith.maximumf %15, %14 : vector<8x128xf32>
      %17 = vector.broadcast %cst_10 : f32 to vector<8x128xf32>
      %18 = arith.minimumf %17, %16 : vector<8x128xf32>
      %c0_11 = arith.constant 0 : index
      %c0_12 = arith.constant 0 : index
      %19 = vector.load %arg5[%c0_11, %c0_12] : memref<8x128xf32, #tpu.memory_space<vmem>>, vector<8x128xf32>
      tpu.vector_store %arg5[%c0_11, %c0_12], %18 {strides = array<i32>} : memref<8x128xf32, #tpu.memory_space<vmem>>, vector<8x128xf32>,
    } else {
    }
    %c0_1 = arith.constant 0 : index
    %4 = memref.load %arg1[%c0_1] : memref<1xi32, #tpu.memory_space<smem>>
    %c0_i32_2 = arith.constant 0 : i32
    %5 = arith.cmpi sle, %4, %c0_i32_2 : i32
    %6 = arith.extui %5 : i1 to i32
    %c0_i32_3 = arith.constant 0 : i32
    %7 = arith.cmpi ne, %6, %c0_i32_3 : i32
    scf.if %7 {
      %c0_4 = arith.constant 0 : index
      %c0_5 = arith.constant 0 : index
      %8 = vector.load %arg2[%c0_4, %c0_5] : memref<8x128xf32, #tpu.memory_space<vmem>>, vector<8x128xf32>
      %c0_6 = arith.constant 0 : index
      %c0_7 = arith.constant 0 : index
      %9 = vector.load %arg5[%c0_6, %c0_7] : memref<8x128xf32, #tpu.memory_space<vmem>>, vector<8x128xf32>
      tpu.vector_store %arg5[%c0_6, %c0_7], %8 {strides = array<i32>} : memref<8x128xf32, #tpu.memory_space<vmem>>, vector<8x128xf32>,
    } else {
    }
    return
  }
  func.func @transform_0(%arg0: i32, %arg1: memref<1xi32, #tpu.memory_space<smem>>) -> (i32, i32) {
    %c0_i32 = arith.constant 0 : i32
    %c0_i32_0 = arith.constant 0 : i32
    return %arg0, %c0_i32 : i32, i32
  }
  func.func @transform_1(%arg0: i32, %arg1: memref<1xi32, #tpu.memory_space<smem>>) -> (i32, i32) {
    %c0_i32 = arith.constant 0 : i32
    %c0_i32_0 = arith.constant 0 : i32
    %c0_i32_1 = arith.constant 0 : i32
    return %c0_i32, %c0_i32_0 : i32, i32
  }
  func.func @transform_2(%arg0: i32, %arg1: memref<1xi32, #tpu.memory_space<smem>>) -> (i32, i32) {
    %c0_i32 = arith.constant 0 : i32
    %c0_i32_0 = arith.constant 0 : i32
    %c0_i32_1 = arith.constant 0 : i32
    return %c0_i32, %c0_i32_0 : i32, i32
  }
  func.func @transform_3(%arg0: i32, %arg1: memref<1xi32, #tpu.memory_space<smem>>) -> (i32, i32) {
    %c0_i32 = arith.constant 0 : i32
    %c0_i32_0 = arith.constant 0 : i32
    return %arg0, %c0_i32 : i32, i32
  }
}

</mosaic_0001>

<llo_original>
// kernel: tpu_custom_call.1
$region0: #{tpu_custom_call.1}
  #allocation0 [shape = 'u32[]', space=smem, size = 0x4, offset = 0x4, fixed_abs, tag = 'smem constant byte address 0x4 - core index']
  #allocation1 [shape = 'u32[144,128]{1,0:T(1,128)}', space=vmem, size = 0x12000, scoped, tag = 'internal scratch']
  #allocation2 [shape = 's32[1]{0}', space=sflag, size = 0x4, scoped, tag = 'scoped memory for tpu_custom_call.1']
  #allocation3 [shape = 's32[1]{0:T(128)S(6)}', space=smem, size = 0x200, scoped, tag = 'prefetched SMEM operand 0']
  %s0 = inlined_call_operand.<no memory space> [shape: s32[1], index: 0, kind: input, shape index: {}]
  %s1 = inlined_call_operand.hbm [shape: f32[8,128], index: 1, kind: input, shape index: {}]
  %s2 = inlined_call_operand.vmem [shape: f32[1,128], index: 2, kind: input, shape index: {}]
  %s3 = inlined_call_operand.vmem [shape: f32[1,128], index: 3, kind: input, shape index: {}]
  %s4 = inlined_call_operand.hbm [shape: f32[8,128], index: 4, kind: output, shape index: {}]
  %s5 = sld [smem:[#allocation0]]
  $region34: #{tpu_custom_call.1} parent=0
    _
  %s7 = ssub.s32 1, %s5
  %s8 = scalar_select 0, %s7, %s5
  %9 = sst [smem:[#allocation3]] %s0
  $region1: #{tpu_custom_call.1} parent=0
    #allocation4 [shape = 'u8[4096]{0}', space=vmem, size = 0x1000, scoped, tag = 'input window, operand 1, single buffered']
    #allocation5 [shape = 's32[1]{0}', space=sflag, size = 0x4, scoped, tag = 'scoped memory for tpu_custom_call.1']
    #allocation6 [shape = 's32[1]{0}', space=sflag, size = 0x4, scoped, tag = 'scoped memory for tpu_custom_call.1']
    #allocation7 [shape = 'u8[4096]{0}', space=vmem, size = 0x1000, scoped, tag = 'output window, operand 0, single buffered']
    %10 = vsyncpa [#allocation5], 0
    %11 = vsyncpa [#allocation6], 0
    // Predicated region
    $region2: #{tpu_custom_call.1} parent=1 // pred_check
      _
    $region3: #{tpu_custom_call.1} parent=1 // pred_check_branch
      %13 = sbr.rel (0) target = $region5
    $region4: #{tpu_custom_call.1} parent=1 // pred_region
      %s15 = ssub.s32 128, 128
      %16 = vsyncadd [#allocation5], %s15
      %s18 = sshll.u32 [#allocation4], 4
      %s19 = int_to_ptr.vmem [resolvable:$true] %s18
      %21 = dma.hbm_to_vmem [thread:$0]  %s1, 128, %s19, [#allocation5]
    $region5: #{tpu_custom_call.1} parent=1 // pred_fallthru
      _
    // Predicated region
    $region6: #{tpu_custom_call.1} parent=1 // pred_check
      _
    $region7: #{tpu_custom_call.1} parent=1 // pred_check_branch
      %23 = sbr.rel (0) target = $region9
    $region8: #{tpu_custom_call.1} parent=1 // pred_region
      _
    $region9: #{tpu_custom_call.1} parent=1 // pred_fallthru
      _
    // Predicated region
    $region10: #{tpu_custom_call.1} parent=1 // pred_check
      _
    $region11: #{tpu_custom_call.1} parent=1 // pred_check_branch
      %25 = sbr.rel (0) target = $region13
    $region12: #{tpu_custom_call.1} parent=1 // pred_region
      _
    $region13: #{tpu_custom_call.1} parent=1 // pred_fallthru
      _
    // Predicated region
    $region14: #{tpu_custom_call.1} parent=1 // pred_check
      _
    $region15: #{tpu_custom_call.1} parent=1 // pred_check_branch
      %27 = sbr.rel (0) target = $region17
    $region16: #{tpu_custom_call.1} parent=1 // pred_region
      %28 = dma.done [#allocation5], 128
    $region17: #{tpu_custom_call.1} parent=1 // pred_fallthru
      _
    %s29 = sld [smem:[#allocation3]]
    %p30 = scmp.gt.s32.totalorder %s29, 0
    // Predicated region
    $region18: #{tpu_custom_call.1} parent=1 // pred_check
      %p31 = pneg %p30
    $region19: #{tpu_custom_call.1} parent=1 // pred_check_branch
      %33 = sbr.rel (%p31) target = $region21
    $region20: #{tpu_custom_call.1} parent=1 // pred_region
      %v34 = vld [vmem:[#allocation4] sm:$0xff]
      %v35 = vld [vmem:[%s2] sm:$0x1]
      %v37 = vlaneseq
      %v38 = vshrl.u32 %v37, 7
      %v39 = vsub.s32 0, %v38
      %v40 = vrot.slane %v35, %v39
      %v42 = vmul.f32 %v34, %v40
      %v43 = vld [vmem:[%s3] sm:$0x1]
      %v45 = vlaneseq
      %v46 = vshrl.u32 %v45, 7
      %v47 = vsub.s32 0, %v46
      %v48 = vrot.slane %v43, %v47
      %v50 = vadd.f32 %v42, %v48
      %v51 = vmax.f32 %v50, -5.0
      %v52 = vmin.f32 %v51, 5.0
      %53 = vst [vmem:[#allocation7] sm:$0xff] %v52
    $region21: #{tpu_custom_call.1} parent=1 // pred_fallthru
      _
    %s54 = sld [smem:[#allocation3]]
    %p55 = scmp.le.s32.totalorder %s54, 0
    // Predicated region
    $region22: #{tpu_custom_call.1} parent=1 // pred_check
      %p56 = pneg %p55
    $region23: #{tpu_custom_call.1} parent=1 // pred_check_branch
      %58 = sbr.rel (%p56) target = $region25
    $region24: #{tpu_custom_call.1} parent=1 // pred_region
      %v59 = vld [vmem:[#allocation4] sm:$0xff]
      %60 = vst [vmem:[#allocation7] sm:$0xff] %v59
    $region25: #{tpu_custom_call.1} parent=1 // pred_fallthru
      _
    // Predicated region
    $region26: #{tpu_custom_call.1} parent=1 // pred_check
      _
    $region27: #{tpu_custom_call.1} parent=1 // pred_check_branch
      %62 = sbr.rel (0) target = $region29
    $region28: #{tpu_custom_call.1} parent=1 // pred_region
      %s64 = ssub.s32 128, 128
      %65 = vsyncadd [#allocation6], %s64
      %s67 = sshll.u32 [#allocation7], 4
      %s68 = int_to_ptr.vmem [resolvable:$true] %s67
      %70 = dma.vmem_to_hbm [thread:$0]  %s68, 128, %s4, [#allocation6]
    $region29: #{tpu_custom_call.1} parent=1 // pred_fallthru
      _
    // Predicated region
    $region30: #{tpu_custom_call.1} parent=1 // pred_check
      _
    $region31: #{tpu_custom_call.1} parent=1 // pred_check_branch
      %72 = sbr.rel (0) target = $region33
    $region32: #{tpu_custom_call.1} parent=1 // pred_region
      %73 = dma.done [#allocation6], 128
    $region33: #{tpu_custom_call.1} parent=1 // pred_fallthru
      _
    %74 = vsyncpa [#allocation5], 1
    %75 = vsyncpa [#allocation6], 1

</llo_original>
